<compile_context>
chip_gen: v6e
topology: v6e:2x2x1
jax: 0.10.0
libtpu: 0.0.40
codegen_flags: <defaults>
</compile_context>

<pallas_src>
import functools

import jax
import jax.numpy as jnp
import numpy as np
from jax.experimental import pallas as pl
from jax.experimental.pallas import tpu as pltpu


# ----------------------------------------------------------------------------
# forward kernel:  out[:, n] = G @ q[:, n]   (lane axis = flattened T*H*W)
# ----------------------------------------------------------------------------
def _gcv_forward_kernel(g_ref, q_ref, o_ref):
    # g_ref: (Cv, Ck)      context volume, constant across the grid
    # q_ref: (1, Ck, TN)   query tile, lane axis = flattened spatial axis
    # o_ref: (1, Cv, TN)   output tile (lane-dense, single unmasked store)
    g = g_ref[...].astype(jnp.float32)          # (Cv, Ck)
    q = q_ref[0].astype(jnp.float32)            # (Ck, TN)
    ck = g.shape[1]

    # out[v, n] = sum_k g[v, k] * q[k, n]
    # Ck is tiny (4), so do the contraction as Ck broadcast FMAs on the VPU
    # instead of a K=4 MXU matmul; f32 accumulation throughout.
    acc = g[:, 0:1] * q[0:1, :]                 # (Cv,1) * (1,TN) -> (Cv,TN)
    for k in range(1, ck):                      # static unroll
        acc = acc + g[:, k : k + 1] * q[k : k + 1, :]

    o_ref[0] = acc.astype(o_ref.dtype)


@functools.partial(jax.jit, static_argnames=("lane_tile",))
def global_context_forward(query, context_volume, *, lane_tile=16384):
    """query: [B, C_k, T, H, W], context_volume: [C_v, C_k] -> [B, C_v, T, H, W]."""
    B, Ck, T, H, W = query.shape
    Cv, Ck2 = context_volume.shape
    assert Ck == Ck2

    N = T * H * W
    q3 = query.reshape(B, Ck, N)  # contiguous view of the PyTorch layout

    if N <= lane_tile:
        tn = N                      # full-extent last dim (always legal)
        n_tiles = 1
    else:
        tn = lane_tile - lane_tile % 128   # lane-dense tile, multiple of 128
        n_tiles = pl.cdiv(N, tn)           # ragged last block handled by Pallas

    out3 = pl.pallas_call(
        _gcv_forward_kernel,
        out_shape=jax.ShapeDtypeStruct((B, Cv, N), query.dtype),
        grid_spec=pltpu.PrefetchScalarGridSpec(
            num_scalar_prefetch=0,
            grid=(B, n_tiles),
            in_specs=[
                # G: constant block index -> DMA'd once, stays resident.
                pl.BlockSpec((Cv, Ck), lambda b, i: (0, 0)),
                pl.BlockSpec((1, Ck, tn), lambda b, i: (b, 0, i)),
            ],
            out_specs=pl.BlockSpec((1, Cv, tn), lambda b, i: (b, 0, i)),
        ),
        compiler_params=pltpu.CompilerParams(
            # both axes independent -> shard across TensorCores (v7x megacore)
            dimension_semantics=("parallel", "parallel"),
        ),
    )(context_volume, q3)

    return out3.reshape(B, Cv, T, H, W)


# ----------------------------------------------------------------------------
# update kernel:  G = mean over T of stacked local contexts [T, C_v, C_k]
# (single grid step: the whole stack is a few KB)
# ----------------------------------------------------------------------------
def _gcv_update_kernel(stack_ref, o_ref):
    s = stack_ref[...].astype(jnp.float32)      # (T, Cv, Ck)
    o_ref[...] = jnp.mean(s, axis=0).astype(o_ref.dtype)


@jax.jit
def global_context_update(local_contexts_stacked):
    """local_contexts_stacked: [T, C_v, C_k] -> context_volume [C_v, C_k]."""
    T, Cv, Ck = local_contexts_stacked.shape
    return pl.pallas_call(
        _gcv_update_kernel,
        out_shape=jax.ShapeDtypeStruct((Cv, Ck), local_contexts_stacked.dtype),
    )(local_contexts_stacked)


# ----------------------------------------------------------------------------
# demo / self-check
# ----------------------------------------------------------------------------
if __name__ == "__main__":
    # module hyper-params (keydim=C_k, valdim=C_v)
    keydim, valdim = 4, 8
    B, T, H, W = 2, 8, 16, 16

    key = jax.random.PRNGKey(0)
    k_q, k_ctx = jax.random.split(key)

    # query [B, C_k, T, H, W]
    query = jax.random.normal(k_q, (B, keydim, T, H, W), dtype=jnp.float32)

    # The buffer is registered as zeros in __init__ and then filled via
    # update(); emulate that deterministically with random local contexts.
    local_contexts = jax.random.normal(k_ctx, (T, valdim, keydim), dtype=jnp.float32)

    context_volume = global_context_update(local_contexts)      # [C_v, C_k]
    out = global_context_forward(query, context_volume)         # [B, C_v, T, H, W]
    out = jax.block_until_ready(out)

    # reference check (plain JAX)
    ctx_ref = jnp.mean(local_contexts, axis=0)
    out_ref = jnp.einsum("vk,bkthw->bvthw", ctx_ref, query)
    np.testing.assert_allclose(np.asarray(context_volume), np.asarray(ctx_ref),
                               rtol=1e-6, atol=1e-6)
    np.testing.assert_allclose(np.asarray(out), np.asarray(out_ref),
                               rtol=1e-5, atol=1e-5)
    assert out.shape == (B, valdim, T, H, W)

    print("KERNEL_OK")
</pallas_src>

<mosaic_0001>
module attributes {stable_mosaic.version = 11 : i64} {
  func.func @_gcv_update_kernel(%arg0: memref<8x8x4xf32, #tpu.memory_space<vmem>>, %arg1: memref<8x4xf32, #tpu.memory_space<vmem>>) attributes {dimension_semantics = [], scalar_prefetch = 0 : i64, scratch_operands = 0 : i64, tpu.core_type = #tpu.core_type<tc>} {
    %c0 = arith.constant 0 : index
    %c0_0 = arith.constant 0 : index
    %c0_1 = arith.constant 0 : index
    %0 = vector.load %arg0[%c0, %c0_0, %c0_1] : memref<8x8x4xf32, #tpu.memory_space<vmem>>, vector<8x8x4xf32>
    %cst = arith.constant dense<0.000000e+00> : vector<8x4xf32>
    %1 = vector.multi_reduction <add>, %0, %cst [0] : vector<8x8x4xf32> to vector<8x4xf32>
    %cst_2 = arith.constant 8.000000e+00 : f32
    %2 = vector.broadcast %cst_2 : f32 to vector<8x4xf32>
    %3 = arith.divf %1, %2 : vector<8x4xf32>
    %c0_3 = arith.constant 0 : index
    %c0_4 = arith.constant 0 : index
    %4 = vector.load %arg1[%c0_3, %c0_4] : memref<8x4xf32, #tpu.memory_space<vmem>>, vector<8x4xf32>
    tpu.vector_store %arg1[%c0_3, %c0_4], %3 {strides = array<i32>} : memref<8x4xf32, #tpu.memory_space<vmem>>, vector<8x4xf32>,
    return
  }
}

</mosaic_0001>

<llo_original>
// kernel: global_context_update.1
$region0: #{global_context_update.1}
  #allocation0 [shape = 'u32[]', space=smem, size = 0x4, offset = 0x4, fixed_abs, tag = 'smem constant byte address 0x4 - core index']
  #allocation1 [shape = 'u32[144,128]{1,0:T(1,128)}', space=vmem, size = 0x12000, scoped, tag = 'internal scratch']
  %s0 = inlined_call_operand.vmem [shape: f32[8,8,4], index: 0, kind: input, shape index: {}]
  %s1 = inlined_call_operand.vmem [shape: f32[8,4], index: 1, kind: output, shape index: {}]
  %s2 = sld [smem:[#allocation0]]
  $region14: #{global_context_update.1} parent=0
    _
  %s4 = ssub.s32 1, %s2
  %s5 = scalar_select 0, %s4, %s2
  // Predicated region
  $region2: #{global_context_update.1} parent=0 // pred_check
    _
  $region3: #{global_context_update.1} parent=0 // pred_check_branch
    %7 = sbr.rel (0) target = $region5
  $region4: #{global_context_update.1} parent=0 // pred_region
    _
  $region5: #{global_context_update.1} parent=0 // pred_fallthru
    _
  %v8 = vld [vmem:[%s0] sm:$0xff]
  %v9 = vld [vmem:[%s0 + $0x8] sm:$0xff]
  %v10 = vld [vmem:[%s0 + $0x10] sm:$0xff]
  %v11 = vld [vmem:[%s0 + $0x18] sm:$0xff]
  %v12 = vld [vmem:[%s0 + $0x20] sm:$0xff]
  %v13 = vld [vmem:[%s0 + $0x28] sm:$0xff]
  %v14 = vld [vmem:[%s0 + $0x30] sm:$0xff]
  %v15 = vld [vmem:[%s0 + $0x38] sm:$0xff]
  %vm16 = vcmask 31744
  %v17 = vsel %vm16, %v8, 0.0
  %v18 = vsel %vm16, %v9, 0.0
  %v19 = vadd.f32 %v17, %v18
  %v20 = vsel %vm16, %v10, 0.0
  %v21 = vadd.f32 %v19, %v20
  %v22 = vsel %vm16, %v11, 0.0
  %v23 = vadd.f32 %v21, %v22
  %v24 = vsel %vm16, %v12, 0.0
  %v25 = vadd.f32 %v23, %v24
  %v26 = vsel %vm16, %v13, 0.0
  %v27 = vadd.f32 %v25, %v26
  %v28 = vsel %vm16, %v14, 0.0
  %v29 = vadd.f32 %v27, %v28
  %v30 = vsel %vm16, %v15, 0.0
  %v31 = vadd.f32 %v29, %v30
  %v32 = vrcp.pop 8.0
  %v33 = vmul.f32 %v31, %v32
  %34 = vst.msk [vmem:[%s1] sm:$0xff] %vm16, %v33
  // Predicated region
  $region6: #{global_context_update.1} parent=0 // pred_check
    _
  $region7: #{global_context_update.1} parent=0 // pred_check_branch
    %36 = sbr.rel (0) target = $region9
  $region8: #{global_context_update.1} parent=0 // pred_region
    _
  $region9: #{global_context_update.1} parent=0 // pred_fallthru
    _
  // Predicated region
  $region10: #{global_context_update.1} parent=0 // pred_check
    _
  $region11: #{global_context_update.1} parent=0 // pred_check_branch
    %38 = sbr.rel (0) target = $region13
  $region12: #{global_context_update.1} parent=0 // pred_region
    _
  $region13: #{global_context_update.1} parent=0 // pred_fallthru
    _

</llo_original>
